<compile_context>
chip_gen: v5e
topology: v5e:2x2
jax: 0.10.0
libtpu: 0.0.40
codegen_flags: <defaults>
</compile_context>

<pallas_src>
import functools

import jax
import jax.numpy as jnp
from jax import lax
from jax.experimental import pallas as pl
from jax.experimental.pallas import tpu as pltpu


def _dwconv_kernel(x_ref, w_ref, b_ref, o_ref, *, strip):
    # x_ref : (1, H, W, TC)  un-padded input block (full spatial, TC channels)
    # w_ref : (3, 3, TC)     depthwise weights, channels last
    # b_ref : (1, TC)        bias
    # o_ref : (1, H, W, TC)  output block
    H, W, TC = o_ref.shape[1], o_ref.shape[2], o_ref.shape[3]

    # Hoisted per-grid-step constants (tiny).
    wf = w_ref[...].astype(jnp.float32)                  # (3, 3, TC)
    bias = b_ref[0, :].astype(jnp.float32)               # (TC,)
    col = lax.broadcasted_iota(jnp.int32, (1, 1, W, 1), 2)
    mask_l = (col != 0).astype(jnp.float32)              # kills wrapped col 0   (kw=0)
    mask_r = (col != W - 1).astype(jnp.float32)          # kills wrapped col W-1 (kw=2)

    n_strips = -(-H // strip)                            # static unroll count
    for si in range(n_strips):
        r0 = si * strip
        rows = min(strip, H - r0)

        # Source window covers rows [r0-1, r0+rows] clipped to the image;
        # zero rows are appended at the image top/bottom so every output row i
        # uniformly reads window rows i+kh, kh in {0,1,2} (no per-row masking).
        lo = max(r0 - 1, 0)
        hi = min(r0 + rows + 1, H)
        parts = []
        if r0 == 0:
            parts.append(jnp.zeros((1, 1, W, TC), jnp.float32))
        parts.append(x_ref[:, pl.ds(lo, hi - lo), :, :].astype(jnp.float32))
        if r0 + rows == H:
            parts.append(jnp.zeros((1, 1, W, TC), jnp.float32))
        xw = parts[0] if len(parts) == 1 else jnp.concatenate(parts, axis=1)
        # xw: (1, rows + 2, W, TC) f32 window value.

        # f32 register accumulator for this strip, initialized to the bias
        # (saves a zero-init pass and a separate bias-add pass).
        acc = jnp.broadcast_to(bias, (1, rows, W, TC))

        # kw taps: the expensive W shift (sublane axis) is materialized once
        # per kw via pltpu.roll (XLU) + one mask multiply; the kh taps are
        # free static slices along the major dim of the small window value.
        for kw in range(3):
            if kw == 0:
                xs = pltpu.roll(xw, shift=1, axis=2) * mask_l
            elif kw == 1:
                xs = xw
            else:
                xs = pltpu.roll(xw, shift=W - 1, axis=2) * mask_r
            for kh in range(3):
                acc = acc + xs[:, kh:kh + rows, :, :] * wf[kh, kw, :]

        # Single lane-dense store per strip.
        o_ref[:, pl.ds(r0, rows), :, :] = acc.astype(o_ref.dtype)


def _vmem_capacity_bytes():
    try:
        return int(pltpu.get_tpu_info().vmem_capacity_bytes)
    except Exception:
        return 64 * 1024 * 1024  # conservative default: v7x per-TensorCore


def _choose_channel_tile(c_pad, h, w, itemsize, vmem_cap):
    """Largest multiple-of-128 channel tile dividing c_pad whose block fits the
    generation-aware budget (bigger blocks on 128-MiB-VMEM v5e/v6e to amortize
    per-step overhead, tighter on v7x's 64 MiB/TC)."""
    budget = 6 * 1024 * 1024 if vmem_cap >= 96 * 1024 * 1024 else (5 * 1024 * 1024) // 2
    best = 128
    tc = 128
    while tc <= c_pad:
        if c_pad % tc == 0 and h * w * tc * itemsize <= budget:
            best = tc
        tc += 128
    return best


def _choose_strip(h, w, tc):
    """Row-strip size: keep the f32 strip accumulator around <=16 vregs so the
    per-strip working set (haloed window + one shifted copy + acc) stays close
    to the 64-vreg file; cap the static unroll count."""
    per_row = w * tc * 4
    s = max(1, (64 * 1024) // per_row)
    s = min(s, 8, h)
    s = max(s, -(-h // 32))
    return s


@functools.partial(jax.jit, static_argnums=(3, 4))
def dwconv_pallas(x, weight, bias, H, W):
    """x: (B, N, C) with N == H*W. weight: (C, 1, 3, 3) (PyTorch). bias: (C,)."""
    B, N, C = x.shape
    assert N == H * W

    # (B, N, C) -> (B, H, W, C): free row-major reshape; n = h*W + w matches
    # PyTorch's (b c (h w)) -> (b c h w) rearrange.
    x_hwc = x.reshape(B, H, W, C)

    # Lane-dense channels: pad C to a multiple of 128 so stores are full-lane.
    # No-op for the module default dim=768.
    C_pad = ((C + 127) // 128) * 128
    w_cl = jnp.transpose(weight[:, 0, :, :], (1, 2, 0))  # (3, 3, C)
    b_cl = bias.reshape(1, C)
    if C_pad != C:
        x_hwc = jnp.pad(x_hwc, ((0, 0), (0, 0), (0, 0), (0, C_pad - C)))
        w_cl = jnp.pad(w_cl, ((0, 0), (0, 0), (0, C_pad - C)))
        b_cl = jnp.pad(b_cl, ((0, 0), (0, C_pad - C)))

    itemsize = jnp.dtype(x.dtype).itemsize
    vmem_cap = _vmem_capacity_bytes()
    TC = _choose_channel_tile(C_pad, H, W, itemsize, vmem_cap)
    strip = _choose_strip(H, W, TC)

    # vmem limit from actual need: double-buffered in + out blocks + weights.
    blk_bytes = H * W * TC * itemsize
    vmem_limit = 4 * blk_bytes + 4 * 1024 * 1024
    vmem_limit = int(max(16 * 1024 * 1024, min(vmem_limit, (vmem_cap * 3) // 4)))

    # Channel tiles outer, batch inner: weight/bias block index is constant
    # along the inner axis (no redundant refetch).
    grid = (C_pad // TC, B)
    # TODO(synk): for very large H*W with C <= 128 a single channel tile can
    # exceed the VMEM budget, and B=1 single-tile cases give too few grid
    # steps to occupy both v7x TensorCores; that regime needs an H-strip grid
    # axis with halo blocks.

    kernel = functools.partial(_dwconv_kernel, strip=strip)

    out = pl.pallas_call(
        kernel,
        out_shape=jax.ShapeDtypeStruct((B, H, W, C_pad), x.dtype),
        grid_spec=pltpu.PrefetchScalarGridSpec(
            num_scalar_prefetch=0,
            grid=grid,
            in_specs=[
                pl.BlockSpec((1, H, W, TC), lambda c, b: (b, 0, 0, c)),
                pl.BlockSpec((3, 3, TC), lambda c, b: (0, 0, c)),
                pl.BlockSpec((1, TC), lambda c, b: (0, c)),
            ],
            out_specs=pl.BlockSpec((1, H, W, TC), lambda c, b: (b, 0, 0, c)),
        ),
        compiler_params=pltpu.CompilerParams(
            dimension_semantics=("parallel", "parallel"),
            vmem_limit_bytes=vmem_limit,
        ),
    )(x_hwc, w_cl, b_cl)

    if C_pad != C:
        out = out[..., :C]
    return out.reshape(B, N, C)


def dwconv_reference(x, weight, bias, H, W):
    """Pure-JAX reference matching PyTorch Conv2d(groups=C) semantics (NCHW)."""
    B, N, C = x.shape
    x_nchw = jnp.transpose(x, (0, 2, 1)).reshape(B, C, H, W)
    y = lax.conv_general_dilated(
        x_nchw, weight,
        window_strides=(1, 1), padding=((1, 1), (1, 1)),
        dimension_numbers=("NCHW", "OIHW", "NCHW"),
        feature_group_count=C,
    )
    y = y + bias.reshape(1, C, 1, 1)
    return jnp.transpose(y.reshape(B, C, N), (0, 2, 1))


if __name__ == "__main__":
    def run_case(key, B, H, W, C):
        kx, kw, kb = jax.random.split(key, 3)
        N = H * W
        x = jax.random.normal(kx, (B, N, C), dtype=jnp.float32)
        # Conv2d(C, C, 3, groups=C) weight shape is (C, 1, 3, 3).
        weight = jax.random.normal(kw, (C, 1, 3, 3), dtype=jnp.float32) * 0.1
        bias = jax.random.normal(kb, (C,), dtype=jnp.float32) * 0.1

        out = jax.block_until_ready(dwconv_pallas(x, weight, bias, H, W))
        ref = dwconv_reference(x, weight, bias, H, W)
        assert out.shape == (B, N, C)
        assert jnp.allclose(out, ref, atol=1e-5, rtol=1e-5), (B, H, W, C)

    key0, key1 = jax.random.split(jax.random.PRNGKey(0))
    # Small case exercising the channel lane-padding path and image boundaries.
    run_case(key0, B=2, H=8, W=8, C=32)
    # Lane-dense path (C multiple of 128), multiple row strips and grid steps.
    run_case(key1, B=2, H=16, W=16, C=256)

    print("KERNEL_OK")
</pallas_src>

<mosaic_0001>
module attributes {stable_mosaic.version = 11 : i64} {
  func.func @_dwconv_kernel(%arg0: i32, %arg1: i32, %arg2: memref<1x8x8x128xf32, #tpu.memory_space<vmem>>, %arg3: memref<3x3x128xf32, #tpu.memory_space<vmem>>, %arg4: memref<1x128xf32, #tpu.memory_space<vmem>>, %arg5: memref<1x8x8x128xf32, #tpu.memory_space<vmem>>) attributes {dimension_semantics = [#tpu.dimension_semantics<parallel>, #tpu.dimension_semantics<parallel>], iteration_bounds = array<i64: 1, 2>, scalar_prefetch = 0 : i64, scratch_operands = 0 : i64, tpu.core_type = #tpu.core_type<tc>, window_params = [{transform_indices = @transform_0, window_bounds = array<i64: 1, 8, 8, 128>}, {transform_indices = @transform_1, window_bounds = array<i64: 3, 3, 128>}, {transform_indices = @transform_2, window_bounds = array<i64: 1, 128>}, {transform_indices = @transform_3, window_bounds = array<i64: 1, 8, 8, 128>}]} {
    %c0 = arith.constant 0 : index
    %c0_0 = arith.constant 0 : index
    %c0_1 = arith.constant 0 : index
    %0 = vector.load %arg3[%c0, %c0_0, %c0_1] : memref<3x3x128xf32, #tpu.memory_space<vmem>>, vector<3x3x128xf32>
    %c0_2 = arith.constant 0 : index
    %c0_3 = arith.constant 0 : index
    %1 = vector.load %arg4[%c0_2, %c0_3] : memref<1x128xf32, #tpu.memory_space<vmem>>, vector<1x128xf32>
    %2 = vector.shape_cast %1 : vector<1x128xf32> to vector<128xf32>
    %3 = tpu.iota {dimensions = array<i32: 2>} : vector<1x1x8x1xi32>
    %c0_i32 = arith.constant 0 : i32
    %4 = vector.broadcast %c0_i32 : i32 to vector<1x1x8x1xi32>
    %5 = arith.cmpi ne, %3, %4 : vector<1x1x8x1xi32>
    %6 = arith.extui %5 : vector<1x1x8x1xi1> to vector<1x1x8x1xi32>
    %7 = arith.sitofp %6 : vector<1x1x8x1xi32> to vector<1x1x8x1xf32>
    %c7_i32 = arith.constant 7 : i32
    %8 = vector.broadcast %c7_i32 : i32 to vector<1x1x8x1xi32>
    %9 = arith.cmpi ne, %3, %8 : vector<1x1x8x1xi32>
    %10 = arith.extui %9 : vector<1x1x8x1xi1> to vector<1x1x8x1xi32>
    %11 = arith.sitofp %10 : vector<1x1x8x1xi32> to vector<1x1x8x1xf32>
    %cst = arith.constant 0.000000e+00 : f32
    %12 = vector.broadcast %cst : f32 to vector<1x1x8x128xf32>
    %c0_4 = arith.constant 0 : index
    %c0_5 = arith.constant 0 : index
    %c0_6 = arith.constant 0 : index
    %c0_7 = arith.constant 0 : index
    %13 = vector.load %arg2[%c0_4, %c0_5, %c0_6, %c0_7] : memref<1x8x8x128xf32, #tpu.memory_space<vmem>>, vector<1x8x8x128xf32>
    %cst_8 = arith.constant 0.000000e+00 : f32
    %14 = vector.broadcast %cst_8 : f32 to vector<1x1x8x128xf32>
    %15 = tpu.concatenate %12, %13, %14 in 1 : vector<1x1x8x128xf32>, vector<1x8x8x128xf32>, vector<1x1x8x128xf32> -> vector<1x10x8x128xf32>
    %16 = vector.shape_cast %2 : vector<128xf32> to vector<1x1x1x128xf32>
    %17 = vector.broadcast %16 : vector<1x1x1x128xf32> to vector<1x8x8x128xf32>
    %c1_i32 = arith.constant 1 : i32
    %18 = tpu.dynamic_rotate %15 by %c1_i32 dim 2 : vector<1x10x8x128xf32>, i32 -> vector<1x10x8x128xf32>
    %19 = vector.broadcast %7 : vector<1x1x8x1xf32> to vector<1x10x8x128xf32>
    %20 = arith.mulf %18, %19 : vector<1x10x8x128xf32>
    %21 = vector.extract_strided_slice %20 {offsets = [0, 0, 0, 0], sizes = [1, 8, 8, 128], strides = [1, 1, 1, 1]} : vector<1x10x8x128xf32> to vector<1x8x8x128xf32>
    %22 = vector.extract_strided_slice %0 {offsets = [0, 0, 0], sizes = [1, 1, 128], strides = [1, 1, 1]} : vector<3x3x128xf32> to vector<1x1x128xf32>
    %23 = vector.shape_cast %22 : vector<1x1x128xf32> to vector<128xf32>
    %24 = vector.shape_cast %23 : vector<128xf32> to vector<1x1x1x128xf32>
    %25 = vector.broadcast %24 : vector<1x1x1x128xf32> to vector<1x8x8x128xf32>
    %26 = arith.mulf %21, %25 : vector<1x8x8x128xf32>
    %27 = arith.addf %17, %26 : vector<1x8x8x128xf32>
    %28 = vector.extract_strided_slice %20 {offsets = [0, 1, 0, 0], sizes = [1, 8, 8, 128], strides = [1, 1, 1, 1]} : vector<1x10x8x128xf32> to vector<1x8x8x128xf32>
    %29 = vector.extract_strided_slice %0 {offsets = [1, 0, 0], sizes = [1, 1, 128], strides = [1, 1, 1]} : vector<3x3x128xf32> to vector<1x1x128xf32>
    %30 = vector.shape_cast %29 : vector<1x1x128xf32> to vector<128xf32>
    %31 = vector.shape_cast %30 : vector<128xf32> to vector<1x1x1x128xf32>
    %32 = vector.broadcast %31 : vector<1x1x1x128xf32> to vector<1x8x8x128xf32>
    %33 = arith.mulf %28, %32 : vector<1x8x8x128xf32>
    %34 = arith.addf %27, %33 : vector<1x8x8x128xf32>
    %35 = vector.extract_strided_slice %20 {offsets = [0, 2, 0, 0], sizes = [1, 8, 8, 128], strides = [1, 1, 1, 1]} : vector<1x10x8x128xf32> to vector<1x8x8x128xf32>
    %36 = vector.extract_strided_slice %0 {offsets = [2, 0, 0], sizes = [1, 1, 128], strides = [1, 1, 1]} : vector<3x3x128xf32> to vector<1x1x128xf32>
    %37 = vector.shape_cast %36 : vector<1x1x128xf32> to vector<128xf32>
    %38 = vector.shape_cast %37 : vector<128xf32> to vector<1x1x1x128xf32>
    %39 = vector.broadcast %38 : vector<1x1x1x128xf32> to vector<1x8x8x128xf32>
    %40 = arith.mulf %35, %39 : vector<1x8x8x128xf32>
    %41 = arith.addf %34, %40 : vector<1x8x8x128xf32>
    %42 = vector.extract_strided_slice %15 {offsets = [0, 0, 0, 0], sizes = [1, 8, 8, 128], strides = [1, 1, 1, 1]} : vector<1x10x8x128xf32> to vector<1x8x8x128xf32>
    %43 = vector.extract_strided_slice %0 {offsets = [0, 1, 0], sizes = [1, 1, 128], strides = [1, 1, 1]} : vector<3x3x128xf32> to vector<1x1x128xf32>
    %44 = vector.shape_cast %43 : vector<1x1x128xf32> to vector<128xf32>
    %45 = vector.shape_cast %44 : vector<128xf32> to vector<1x1x1x128xf32>
    %46 = vector.broadcast %45 : vector<1x1x1x128xf32> to vector<1x8x8x128xf32>
    %47 = arith.mulf %42, %46 : vector<1x8x8x128xf32>
    %48 = arith.addf %41, %47 : vector<1x8x8x128xf32>
    %49 = vector.extract_strided_slice %15 {offsets = [0, 1, 0, 0], sizes = [1, 8, 8, 128], strides = [1, 1, 1, 1]} : vector<1x10x8x128xf32> to vector<1x8x8x128xf32>
    %50 = vector.extract_strided_slice %0 {offsets = [1, 1, 0], sizes = [1, 1, 128], strides = [1, 1, 1]} : vector<3x3x128xf32> to vector<1x1x128xf32>
    %51 = vector.shape_cast %50 : vector<1x1x128xf32> to vector<128xf32>
    %52 = vector.shape_cast %51 : vector<128xf32> to vector<1x1x1x128xf32>
    %53 = vector.broadcast %52 : vector<1x1x1x128xf32> to vector<1x8x8x128xf32>
    %54 = arith.mulf %49, %53 : vector<1x8x8x128xf32>
    %55 = arith.addf %48, %54 : vector<1x8x8x128xf32>
    %56 = vector.extract_strided_slice %15 {offsets = [0, 2, 0, 0], sizes = [1, 8, 8, 128], strides = [1, 1, 1, 1]} : vector<1x10x8x128xf32> to vector<1x8x8x128xf32>
    %57 = vector.extract_strided_slice %0 {offsets = [2, 1, 0], sizes = [1, 1, 128], strides = [1, 1, 1]} : vector<3x3x128xf32> to vector<1x1x128xf32>
    %58 = vector.shape_cast %57 : vector<1x1x128xf32> to vector<128xf32>
    %59 = vector.shape_cast %58 : vector<128xf32> to vector<1x1x1x128xf32>
    %60 = vector.broadcast %59 : vector<1x1x1x128xf32> to vector<1x8x8x128xf32>
    %61 = arith.mulf %56, %60 : vector<1x8x8x128xf32>
    %62 = arith.addf %55, %61 : vector<1x8x8x128xf32>
    %c7_i32_9 = arith.constant 7 : i32
    %63 = tpu.dynamic_rotate %15 by %c7_i32_9 dim 2 : vector<1x10x8x128xf32>, i32 -> vector<1x10x8x128xf32>
    %64 = vector.broadcast %11 : vector<1x1x8x1xf32> to vector<1x10x8x128xf32>
    %65 = arith.mulf %63, %64 : vector<1x10x8x128xf32>
    %66 = vector.extract_strided_slice %65 {offsets = [0, 0, 0, 0], sizes = [1, 8, 8, 128], strides = [1, 1, 1, 1]} : vector<1x10x8x128xf32> to vector<1x8x8x128xf32>
    %67 = vector.extract_strided_slice %0 {offsets = [0, 2, 0], sizes = [1, 1, 128], strides = [1, 1, 1]} : vector<3x3x128xf32> to vector<1x1x128xf32>
    %68 = vector.shape_cast %67 : vector<1x1x128xf32> to vector<128xf32>
    %69 = vector.shape_cast %68 : vector<128xf32> to vector<1x1x1x128xf32>
    %70 = vector.broadcast %69 : vector<1x1x1x128xf32> to vector<1x8x8x128xf32>
    %71 = arith.mulf %66, %70 : vector<1x8x8x128xf32>
    %72 = arith.addf %62, %71 : vector<1x8x8x128xf32>
    %73 = vector.extract_strided_slice %65 {offsets = [0, 1, 0, 0], sizes = [1, 8, 8, 128], strides = [1, 1, 1, 1]} : vector<1x10x8x128xf32> to vector<1x8x8x128xf32>
    %74 = vector.extract_strided_slice %0 {offsets = [1, 2, 0], sizes = [1, 1, 128], strides = [1, 1, 1]} : vector<3x3x128xf32> to vector<1x1x128xf32>
    %75 = vector.shape_cast %74 : vector<1x1x128xf32> to vector<128xf32>
    %76 = vector.shape_cast %75 : vector<128xf32> to vector<1x1x1x128xf32>
    %77 = vector.broadcast %76 : vector<1x1x1x128xf32> to vector<1x8x8x128xf32>
    %78 = arith.mulf %73, %77 : vector<1x8x8x128xf32>
    %79 = arith.addf %72, %78 : vector<1x8x8x128xf32>
    %80 = vector.extract_strided_slice %65 {offsets = [0, 2, 0, 0], sizes = [1, 8, 8, 128], strides = [1, 1, 1, 1]} : vector<1x10x8x128xf32> to vector<1x8x8x128xf32>
    %81 = vector.extract_strided_slice %0 {offsets = [2, 2, 0], sizes = [1, 1, 128], strides = [1, 1, 1]} : vector<3x3x128xf32> to vector<1x1x128xf32>
    %82 = vector.shape_cast %81 : vector<1x1x128xf32> to vector<128xf32>
    %83 = vector.shape_cast %82 : vector<128xf32> to vector<1x1x1x128xf32>
    %84 = vector.broadcast %83 : vector<1x1x1x128xf32> to vector<1x8x8x128xf32>
    %85 = arith.mulf %80, %84 : vector<1x8x8x128xf32>
    %86 = arith.addf %79, %85 : vector<1x8x8x128xf32>
    %c0_10 = arith.constant 0 : index
    %c0_11 = arith.constant 0 : index
    %c0_12 = arith.constant 0 : index
    %c0_13 = arith.constant 0 : index
    %87 = vector.load %arg5[%c0_10, %c0_11, %c0_12, %c0_13] : memref<1x8x8x128xf32, #tpu.memory_space<vmem>>, vector<1x8x8x128xf32>
    tpu.vector_store %arg5[%c0_10, %c0_11, %c0_12, %c0_13], %86 {strides = array<i32>} : memref<1x8x8x128xf32, #tpu.memory_space<vmem>>, vector<1x8x8x128xf32>,
    return
  }
  func.func @transform_0(%arg0: i32, %arg1: i32) -> (i32, i32, i32, i32) {
    %c0_i32 = arith.constant 0 : i32
    %c0_i32_0 = arith.constant 0 : i32
    %c0_i32_1 = arith.constant 0 : i32
    return %arg1, %c0_i32, %c0_i32_0, %arg0 : i32, i32, i32, i32
  }
  func.func @transform_1(%arg0: i32, %arg1: i32) -> (i32, i32, i32) {
    %c0_i32 = arith.constant 0 : i32
    %c0_i32_0 = arith.constant 0 : i32
    %c0_i32_1 = arith.constant 0 : i32
    return %c0_i32, %c0_i32_0, %arg0 : i32, i32, i32
  }
  func.func @transform_2(%arg0: i32, %arg1: i32) -> (i32, i32) {
    %c0_i32 = arith.constant 0 : i32
    %c0_i32_0 = arith.constant 0 : i32
    return %c0_i32, %arg0 : i32, i32
  }
  func.func @transform_3(%arg0: i32, %arg1: i32) -> (i32, i32, i32, i32) {
    %c0_i32 = arith.constant 0 : i32
    %c0_i32_0 = arith.constant 0 : i32
    %c0_i32_1 = arith.constant 0 : i32
    return %arg1, %c0_i32, %c0_i32_0, %arg0 : i32, i32, i32, i32
  }
}

</mosaic_0001>

<llo_original>
// kernel: dwconv_pallas.1
$region0: #{dwconv_pallas.1}
  #allocation0 [shape = 'u32[]', space=smem, size = 0x4, offset = 0x4, fixed_abs, tag = 'smem constant byte address 0x4 - core index']
  #allocation1 [shape = 'u32[72,128]{1,0:T(1,128)}', space=vmem, size = 0x9000, scoped, tag = 'internal scratch']
  %s0 = inlined_call_operand.vmem [shape: f32[2,8,8,128], index: 0, kind: input, shape index: {}]
  %s1 = inlined_call_operand.vmem [shape: f32[3,3,128], index: 1, kind: input, shape index: {}]
  %s2 = inlined_call_operand.vmem [shape: f32[1,128], index: 2, kind: input, shape index: {}]
  %s3 = inlined_call_operand.vmem [shape: f32[2,8,8,128], index: 3, kind: output, shape index: {}]
  %s4 = sld [smem:[#allocation0]]
  $region45: #{dwconv_pallas.1} parent=0
    _
  %s6 = ssub.s32 1, %s4
  %s7 = scalar_select 0, %s6, %s4
  loop: start=0, step=1, limit=4
  $region2: #{dwconv_pallas.1} parent=0 // loop_pre_header
    _
  $region3: #{dwconv_pallas.1} parent=0 // loop_header
    %s9 = sphi 0, %s13
    %p10 = scmp.ge.s32.totalorder %s9, 4
    %s16 = sphi 0, %s28
    %s17 = sphi 0, %s24
    %s18 = sphi 0, %s16
    %s19 = sphi 0, %s17
    %s20 = sphi 0, %s18
    %s21 = sphi 0, %s19
    %s33 = sphi 0, %s35
    %s36 = sphi 0, %s33
    %s37 = sphi 0, %s36
    %s53 = sphi 0, %s37
    %s59 = sphi 0, %s61
    %s62 = sphi 0, %s59
    %s63 = sphi 0, %s62
    %s79 = sphi 0, %s63
    %s85 = sphi 0, %s87
    %s88 = sphi 0, %s85
    %s89 = sphi 0, %s88
    %s105 = sphi 0, %s89
    %s113 = sphi 0, %s115
    %s116 = sphi 0, %s113
    %s117 = sphi 0, %s116
    %s133 = sphi 0, %s117
  $region4: #{dwconv_pallas.1} parent=0 // loop_header_branch
    %12 = sbr.rel (%p10) target = $region8
  $region5: #{dwconv_pallas.1} parent=0 // loop_body
    %s14 = ssub.s32 %s9, 1
    %s15 = ssub.s32 %s9, 2
    %s22 = sadd.s32 1, %s17
    %p23 = scmp.ge.s32.totalorder %s22, 2
    %s24 = scalar_select %p23, 0, %s22
    %s25 = sadd.s32 1, %s16
    %s26 = scalar_select %p23, %s25, %s16
    %p27 = scmp.ge.s32.totalorder %s26, 1
    %s28 = scalar_select %p27, 0, %s26
    %s29 = ssub.s32 %s17, %s24
    %s30 = ssub.s32 %s16, %s28
    %s31 = sor.u32 %s29, %s30
    %p32 = scmp.eq.s32.totalorder %s31, 0
    %s34 = sadd.s32 %s33, 1
    %s35 = scalar_select %p32, %s33, %s34
    %p38 = pneg %p32
    %p39 = scmp.eq.s32.totalorder %s9, 1
    %p40 = por %p38, %p39
    %p41 = scmp.ne.s32.totalorder %s33, %s36
    %p42 = scmp.eq.s32.totalorder %s9, 0
    %p43 = por %p41, %p42
    %p44 = scmp.ne.s32.totalorder %s33, %s36
    %p45 = scmp.eq.s32.totalorder %s14, 1
    %p46 = por %p44, %p45
    %p47 = scmp.ne.s32.totalorder %s36, %s37
    %p48 = scmp.eq.s32.totalorder %s14, 0
    %p49 = por %p47, %p48
    %p50 = scmp.ne.s32.totalorder %s36, %s37
    %p51 = scmp.eq.s32.totalorder %s15, 1
    %p52 = por %p50, %p51
    %p54 = scmp.ne.s32.totalorder %s37, %s53
    %p55 = scmp.eq.s32.totalorder %s15, 0
    %p56 = por %p54, %p55
    %s57 = ssub.s32 %s16, %s28
    %p58 = scmp.eq.s32.totalorder %s57, 0
    %s60 = sadd.s32 %s59, 1
    %s61 = scalar_select %p58, %s59, %s60
    %p64 = pneg %p58
    %p65 = scmp.eq.s32.totalorder %s9, 1
    %p66 = por %p64, %p65
    %p67 = scmp.ne.s32.totalorder %s59, %s62
    %p68 = scmp.eq.s32.totalorder %s9, 0
    %p69 = por %p67, %p68
    %p70 = scmp.ne.s32.totalorder %s59, %s62
    %p71 = scmp.eq.s32.totalorder %s14, 1
    %p72 = por %p70, %p71
    %p73 = scmp.ne.s32.totalorder %s62, %s63
    %p74 = scmp.eq.s32.totalorder %s14, 0
    %p75 = por %p73, %p74
    %p76 = scmp.ne.s32.totalorder %s62, %s63
    %p77 = scmp.eq.s32.totalorder %s15, 1
    %p78 = por %p76, %p77
    %p80 = scmp.ne.s32.totalorder %s63, %s79
    %p81 = scmp.eq.s32.totalorder %s15, 0
    %p82 = por %p80, %p81
    %s83 = ssub.s32 %s16, %s28
    %p84 = scmp.eq.s32.totalorder %s83, 0
    %s86 = sadd.s32 %s85, 1
    %s87 = scalar_select %p84, %s85, %s86
    %p90 = pneg %p84
    %p91 = scmp.eq.s32.totalorder %s9, 1
    %p92 = por %p90, %p91
    %p93 = scmp.ne.s32.totalorder %s85, %s88
    %p94 = scmp.eq.s32.totalorder %s9, 0
    %p95 = por %p93, %p94
    %p96 = scmp.ne.s32.totalorder %s85, %s88
    %p97 = scmp.eq.s32.totalorder %s14, 1
    %p98 = por %p96, %p97
    %p99 = scmp.ne.s32.totalorder %s88, %s89
    %p100 = scmp.eq.s32.totalorder %s14, 0
    %p101 = por %p99, %p100
    %p102 = scmp.ne.s32.totalorder %s88, %s89
    %p103 = scmp.eq.s32.totalorder %s15, 1
    %p104 = por %p102, %p103
    %p106 = scmp.ne.s32.totalorder %s89, %s105
    %p107 = scmp.eq.s32.totalorder %s15, 0
    %p108 = por %p106, %p107
    %s109 = ssub.s32 %s17, %s24
    %s110 = ssub.s32 %s16, %s28
    %s111 = sor.u32 %s109, %s110
    %p112 = scmp.eq.s32.totalorder %s111, 0
    %s114 = sadd.s32 %s113, 1
    %s115 = scalar_select %p112, %s113, %s114
    %p118 = pneg %p112
    %p119 = scmp.eq.s32.totalorder %s9, 1
    %p120 = por %p118, %p119
    %p121 = scmp.ne.s32.totalorder %s113, %s116
    %p122 = scmp.eq.s32.totalorder %s9, 0
    %p123 = por %p121, %p122
    %p124 = scmp.ne.s32.totalorder %s113, %s116
    %p125 = scmp.eq.s32.totalorder %s14, 1
    %p126 = por %p124, %p125
    %p127 = scmp.ne.s32.totalorder %s116, %s117
    %p128 = scmp.eq.s32.totalorder %s14, 0
    %p129 = por %p127, %p128
    %p130 = scmp.ne.s32.totalorder %s116, %s117
    %p131 = scmp.eq.s32.totalorder %s15, 1
    %p132 = por %p130, %p131
    %p134 = scmp.ne.s32.totalorder %s117, %s133
    %p135 = scmp.eq.s32.totalorder %s15, 0
    %p136 = por %p134, %p135
    %p137 = scmp.le.s32.totalorder 1, %s9
    %p138 = scmp.lt.s32.totalorder %s9, 3
    %p139 = pnand %p137, %p138
    %p140 = pneg %p139
    // Predicated region
    $region9: #{dwconv_pallas.1} parent=5 // pred_check
      _
    $region10: #{dwconv_pallas.1} parent=5 // pred_check_branch
      %142 = sbr.rel (%p139) target = $region12
    $region11: #{dwconv_pallas.1} parent=5 // pred_region
      %s143 = ssub.s32 %s9, 1
      // Predicated region
      $region13: #{dwconv_pallas.1} parent=11 // pred_check
        %p144 = pneg %p75
      $region14: #{dwconv_pallas.1} parent=11 // pred_check_branch
        %146 = sbr.rel (%p144) target = $region16
      $region15: #{dwconv_pallas.1} parent=11 // pred_region
        %p147 = scmp.lt.s32.totalorder %s18, 0
        %s148 = scalar_select %p147, %s18, 0
        %s149 = smul.addr %s148, 4
        %s150 = scalar_lea.vmem %s1, %s149
      $region16: #{dwconv_pallas.1} parent=11 // pred_fallthru
        _
      // Predicated region
      $region17: #{dwconv_pallas.1} parent=11 // pred_check
        %p151 = pneg %p101
      $region18: #{dwconv_pallas.1} parent=11 // pred_check_branch
        %153 = sbr.rel (%p151) target = $region20
      $region19: #{dwconv_pallas.1} parent=11 // pred_region
        %p154 = scmp.lt.s32.totalorder %s18, 0
        %s155 = scalar_select %p154, %s18, 0
        %s156 = scalar_lea.vmem %s2, %s155
      $region20: #{dwconv_pallas.1} parent=11 // pred_fallthru
        _
    $region12: #{dwconv_pallas.1} parent=5 // pred_fallthru
      _
    %p157 = scmp.lt.s32.totalorder %s9, 2
    // Predicated region
    $region21: #{dwconv_pallas.1} parent=5 // pred_check
      %p158 = pneg %p157
    $region22: #{dwconv_pallas.1} parent=5 // pred_check_branch
      %160 = sbr.rel (%p158) target = $region24
    $region23: #{dwconv_pallas.1} parent=5 // pred_region
      // Predicated region
      $region25: #{dwconv_pallas.1} parent=23 // pred_check
        %p161 = pneg %p43
      $region26: #{dwconv_pallas.1} parent=23 // pred_check_branch
        %163 = sbr.rel (%p161) target = $region28
      $region27: #{dwconv_pallas.1} parent=23 // pred_region
        %p164 = scmp.lt.s32.totalorder %s17, 1
        %s165 = scalar_select %p164, %s17, 1
        %p166 = scmp.lt.s32.totalorder %s16, 0
        %s167 = scalar_select %p166, %s16, 0
        %s168 = smul.addr %s165, 8
        %s169 = sadd.s32 %s167, %s168
        %s170 = smul.addr %s169, 8
        %s171 = scalar_lea.vmem %s0, %s170
      $region28: #{dwconv_pallas.1} parent=23 // pred_fallthru
        _
    $region24: #{dwconv_pallas.1} parent=5 // pred_fallthru
      _
    %p172 = scmp.le.s32.totalorder 1, %s9
    %p173 = scmp.lt.s32.totalorder %s9, 3
    %p174 = pnand %p172, %p173
    %p175 = pneg %p174
    // Predicated region
    $region29: #{dwconv_pallas.1} parent=5 // pred_check
      _
    $region30: #{dwconv_pallas.1} parent=5 // pred_check_branch
      %177 = sbr.rel (%p174) target = $region32
    $region31: #{dwconv_pallas.1} parent=5 // pred_region
      %s178 = ssub.s32 %s9, 1
      %p179 = scmp.lt.s32.totalorder %s19, 1
      %s180 = scalar_select %p179, %s19, 1
      %p181 = scmp.lt.s32.totalorder %s18, 0
      %s182 = scalar_select %p181, %s18, 0
      %s183 = smul.addr %s180, 8
      %s184 = sadd.s32 %s182, %s183
      %s185 = smul.addr %s184, 8
      %s186 = scalar_lea.vmem %s0, %s185
      %p187 = pneg %p49
      %p188 = pneg %p46
      %p189 = scmp.lt.s32.totalorder %s18, 0
      %s190 = scalar_select %p189, %s18, 0
      %s191 = smul.addr %s190, 4
      %s192 = scalar_lea.vmem %s1, %s191
      %p193 = pneg %p75
      %p194 = pneg %p72
      %p195 = scmp.lt.s32.totalorder %s18, 0
      %s196 = scalar_select %p195, %s18, 0
      %s197 = scalar_lea.vmem %s2, %s196
      %p198 = pneg %p101
      %p199 = pneg %p98
      %p200 = pneg %p129
      %p201 = pneg %p126
      %p202 = scmp.lt.s32.totalorder %s19, 1
      %s203 = scalar_select %p202, %s19, 1
      %p204 = scmp.lt.s32.totalorder %s18, 0
      %s205 = scalar_select %p204, %s18, 0
      %s206 = smul.addr %s203, 8
      %s207 = sadd.s32 %s205, %s206
      %s208 = smul.addr %s207, 8
      %s209 = scalar_lea.vmem %s3, %s208
      %p210 = scmp.lt.s32.totalorder %s19, 1
      %s211 = scalar_select %p210, %s19, 1
      %p212 = scmp.lt.s32.totalorder %s18, 0
      %s213 = scalar_select %p212, %s18, 0
      %s214 = smul.addr %s211, 8
      %s215 = sadd.s32 %s213, %s214
      %s216 = smul.addr %s215, 8
      %s217 = scalar_lea.vmem %s0, %s216
      %p218 = scmp.lt.s32.totalorder %s18, 0
      %s219 = scalar_select %p218, %s18, 0
      %s220 = smul.addr %s219, 4
      %s221 = scalar_lea.vmem %s1, %s220
      %p222 = scmp.lt.s32.totalorder %s18, 0
      %s223 = scalar_select %p222, %s18, 0
      %s224 = scalar_lea.vmem %s2, %s223
      %p225 = scmp.lt.s32.totalorder %s19, 1
      %s226 = scalar_select %p225, %s19, 1
      %p227 = scmp.lt.s32.totalorder %s18, 0
      %s228 = scalar_select %p227, %s18, 0
      %s229 = smul.addr %s226, 8
      %s230 = sadd.s32 %s228, %s229
      %s231 = smul.addr %s230, 8
      %s232 = scalar_lea.vmem %s3, %s231
      %v233 = vld [vmem:[%s221] sm:$0x7]
      %v234 = vld [vmem:[%s221 + $0x4] sm:$0x7]
      %v235 = vld [vmem:[%s221 + $0x8] sm:$0x7]
      %v236 = vld [vmem:[%s224] sm:$0x1]
      %v237 = vlaneseq
      %v238 = vshrl.u32 %v237, 7
      %vm239 = vcmp.ne.s32.totalorder %v238, 0
      %v240 = vsel %vm239, 1, 0
      %v241 = vcvt.s32.f32 %v240
      %vm242 = vcmp.ne.s32.totalorder %v238, 7
      %v243 = vsel %vm242, 1, 0
      %v244 = vcvt.s32.f32 %v243
      %v245 = vld [vmem:[%s217] sm:$0xff]
      %v246 = vld [vmem:[%s217 + $0x8] sm:$0xff]
      %v247 = vld [vmem:[%s217 + $0x10] sm:$0xff]
      %v248 = vld [vmem:[%s217 + $0x18] sm:$0xff]
      %v249 = vld [vmem:[%s217 + $0x20] sm:$0xff]
      %v250 = vld [vmem:[%s217 + $0x28] sm:$0xff]
      %v251 = vld [vmem:[%s217 + $0x30] sm:$0xff]
      %v252 = vld [vmem:[%s217 + $0x38] sm:$0xff]
      %v254 = vperm.slane %v236, 0
      %v256 = vrot.slane %v245, 7
      %v257 = vrot.slane %v246, 7
      %v258 = vrot.slane %v247, 7
      %v259 = vrot.slane %v248, 7
      %v260 = vrot.slane %v249, 7
      %v261 = vrot.slane %v250, 7
      %v262 = vrot.slane %v251, 7
      %v263 = vrot.slane %v252, 7
      %v264 = vmul.f32 0.0, %v241
      %v265 = vmul.f32 %v256, %v241
      %v266 = vmul.f32 %v257, %v241
      %v267 = vmul.f32 %v258, %v241
      %v268 = vmul.f32 %v259, %v241
      %v269 = vmul.f32 %v260, %v241
      %v270 = vmul.f32 %v261, %v241
      %v271 = vmul.f32 %v262, %v241
      %v272 = vmul.f32 %v263, %v241
      %v273 = vperm.slane %v233, 0
      %v274 = vmul.f32 %v264, %v273
      %v275 = vmul.f32 %v265, %v273
      %v276 = vmul.f32 %v266, %v273
      %v277 = vmul.f32 %v267, %v273
      %v278 = vmul.f32 %v268, %v273
      %v279 = vmul.f32 %v269, %v273
      %v280 = vmul.f32 %v270, %v273
      %v281 = vmul.f32 %v271, %v273
      %v282 = vadd.f32 %v254, %v274
      %v283 = vadd.f32 %v254, %v275
      %v284 = vadd.f32 %v254, %v276
      %v285 = vadd.f32 %v254, %v277
      %v286 = vadd.f32 %v254, %v278
      %v287 = vadd.f32 %v254, %v279
      %v288 = vadd.f32 %v254, %v280
      %v289 = vadd.f32 %v254, %v281
      %v290 = vperm.slane %v234, 0
      %v291 = vmul.f32 %v265, %v290
      %v292 = vmul.f32 %v266, %v290
      %v293 = vmul.f32 %v267, %v290
      %v294 = vmul.f32 %v268, %v290
      %v295 = vmul.f32 %v269, %v290
      %v296 = vmul.f32 %v270, %v290
      %v297 = vmul.f32 %v271, %v290
      %v298 = vmul.f32 %v272, %v290
      %v299 = vadd.f32 %v282, %v291
      %v300 = vadd.f32 %v283, %v292
      %v301 = vadd.f32 %v284, %v293
      %v302 = vadd.f32 %v285, %v294
      %v303 = vadd.f32 %v286, %v295
      %v304 = vadd.f32 %v287, %v296
      %v305 = vadd.f32 %v288, %v297
      %v306 = vadd.f32 %v289, %v298
      %v307 = vperm.slane %v235, 0
      %v308 = vmul.f32 %v266, %v307
      %v309 = vmul.f32 %v267, %v307
      %v310 = vmul.f32 %v268, %v307
      %v311 = vmul.f32 %v269, %v307
      %v312 = vmul.f32 %v270, %v307
      %v313 = vmul.f32 %v271, %v307
      %v314 = vmul.f32 %v272, %v307
      %v315 = vmul.f32 %v264, %v307
      %v316 = vadd.f32 %v299, %v308
      %v317 = vadd.f32 %v300, %v309
      %v318 = vadd.f32 %v301, %v310
      %v319 = vadd.f32 %v302, %v311
      %v320 = vadd.f32 %v303, %v312
      %v321 = vadd.f32 %v304, %v313
      %v322 = vadd.f32 %v305, %v314
      %v323 = vadd.f32 %v306, %v315
      %v324 = vperm.slane %v233, 1
      %v325 = vmul.f32 %v324, 0.0
      %v326 = vmul.f32 %v245, %v324
      %v327 = vmul.f32 %v246, %v324
      %v328 = vmul.f32 %v247, %v324
      %v329 = vmul.f32 %v248, %v324
      %v330 = vmul.f32 %v249, %v324
      %v331 = vmul.f32 %v250, %v324
      %v332 = vmul.f32 %v251, %v324
      %v333 = vadd.f32 %v316, %v325
      %v334 = vadd.f32 %v317, %v326
      %v335 = vadd.f32 %v318, %v327
      %v336 = vadd.f32 %v319, %v328
      %v337 = vadd.f32 %v320, %v329
      %v338 = vadd.f32 %v321, %v330
      %v339 = vadd.f32 %v322, %v331
      %v340 = vadd.f32 %v323, %v332
      %v341 = vperm.slane %v234, 1
      %v342 = vmul.f32 %v245, %v341
      %v343 = vmul.f32 %v246, %v341
      %v344 = vmul.f32 %v247, %v341
      %v345 = vmul.f32 %v248, %v341
      %v346 = vmul.f32 %v249, %v341
      %v347 = vmul.f32 %v250, %v341
      %v348 = vmul.f32 %v251, %v341
      %v349 = vmul.f32 %v252, %v341
      %v350 = vadd.f32 %v333, %v342
      %v351 = vadd.f32 %v334, %v343
      %v352 = vadd.f32 %v335, %v344
      %v353 = vadd.f32 %v336, %v345
      %v354 = vadd.f32 %v337, %v346
      %v355 = vadd.f32 %v338, %v347
      %v356 = vadd.f32 %v339, %v348
      %v357 = vadd.f32 %v340, %v349
      %v358 = vperm.slane %v235, 1
      %v359 = vmul.f32 %v246, %v358
      %v360 = vmul.f32 %v247, %v358
      %v361 = vmul.f32 %v248, %v358
      %v362 = vmul.f32 %v249, %v358
      %v363 = vmul.f32 %v250, %v358
      %v364 = vmul.f32 %v251, %v358
      %v365 = vmul.f32 %v252, %v358
      %v366 = vmul.f32 %v358, 0.0
      %v367 = vadd.f32 %v350, %v359
      %v368 = vadd.f32 %v351, %v360
      %v369 = vadd.f32 %v352, %v361
      %v370 = vadd.f32 %v353, %v362
      %v371 = vadd.f32 %v354, %v363
      %v372 = vadd.f32 %v355, %v364
      %v373 = vadd.f32 %v356, %v365
      %v374 = vadd.f32 %v357, %v366
      %v375 = vrot.slane %v245, 1
      %v376 = vrot.slane %v246, 1
      %v377 = vrot.slane %v247, 1
      %v378 = vrot.slane %v248, 1
      %v379 = vrot.slane %v249, 1
      %v380 = vrot.slane %v250, 1
      %v381 = vrot.slane %v251, 1
      %v382 = vrot.slane %v252, 1
      %v383 = vmul.f32 0.0, %v244
      %v384 = vmul.f32 %v375, %v244
      %v385 = vmul.f32 %v376, %v244
      %v386 = vmul.f32 %v377, %v244
      %v387 = vmul.f32 %v378, %v244
      %v388 = vmul.f32 %v379, %v244
      %v389 = vmul.f32 %v380, %v244
      %v390 = vmul.f32 %v381, %v244
      %v391 = vmul.f32 %v382, %v244
      %v392 = vperm.slane %v233, 2
      %v393 = vmul.f32 %v383, %v392
      %v394 = vmul.f32 %v384, %v392
      %v395 = vmul.f32 %v385, %v392
      %v396 = vmul.f32 %v386, %v392
      %v397 = vmul.f32 %v387, %v392
      %v398 = vmul.f32 %v388, %v392
      %v399 = vmul.f32 %v389, %v392
      %v400 = vmul.f32 %v390, %v392
      %v401 = vadd.f32 %v367, %v393
      %v402 = vadd.f32 %v368, %v394
      %v403 = vadd.f32 %v369, %v395
      %v404 = vadd.f32 %v370, %v396
      %v405 = vadd.f32 %v371, %v397
      %v406 = vadd.f32 %v372, %v398
      %v407 = vadd.f32 %v373, %v399
      %v408 = vadd.f32 %v374, %v400
      %v409 = vperm.slane %v234, 2
      %v410 = vmul.f32 %v384, %v409
      %v411 = vmul.f32 %v385, %v409
      %v412 = vmul.f32 %v386, %v409
      %v413 = vmul.f32 %v387, %v409
      %v414 = vmul.f32 %v388, %v409
      %v415 = vmul.f32 %v389, %v409
      %v416 = vmul.f32 %v390, %v409
      %v417 = vmul.f32 %v391, %v409
      %v418 = vadd.f32 %v401, %v410
      %v419 = vadd.f32 %v402, %v411
      %v420 = vadd.f32 %v403, %v412
      %v421 = vadd.f32 %v404, %v413
      %v422 = vadd.f32 %v405, %v414
      %v423 = vadd.f32 %v406, %v415
      %v424 = vadd.f32 %v407, %v416
      %v425 = vadd.f32 %v408, %v417
      %v426 = vperm.slane %v235, 2
      %v427 = vmul.f32 %v385, %v426
      %v428 = vmul.f32 %v386, %v426
      %v429 = vmul.f32 %v387, %v426
      %v430 = vmul.f32 %v388, %v426
      %v431 = vmul.f32 %v389, %v426
      %v432 = vmul.f32 %v390, %v426
      %v433 = vmul.f32 %v391, %v426
      %v434 = vmul.f32 %v383, %v426
      %v435 = vadd.f32 %v418, %v427
      %v436 = vadd.f32 %v419, %v428
      %v437 = vadd.f32 %v420, %v429
      %v438 = vadd.f32 %v421, %v430
      %v439 = vadd.f32 %v422, %v431
      %v440 = vadd.f32 %v423, %v432
      %v441 = vadd.f32 %v424, %v433
      %v442 = vadd.f32 %v425, %v434
      %443 = vst [vmem:[%s232] sm:$0xff] %v435
      %444 = vst [vmem:[%s232 + $0x8] sm:$0xff] %v436
      %445 = vst [vmem:[%s232 + $0x10] sm:$0xff] %v437
      %446 = vst [vmem:[%s232 + $0x18] sm:$0xff] %v438
      %447 = vst [vmem:[%s232 + $0x20] sm:$0xff] %v439
      %448 = vst [vmem:[%s232 + $0x28] sm:$0xff] %v440
      %449 = vst [vmem:[%s232 + $0x30] sm:$0xff] %v441
      %450 = vst [vmem:[%s232 + $0x38] sm:$0xff] %v442
      %p451 = scmp.lt.s32.totalorder %s19, 1
      %s452 = scalar_select %p451, %s19, 1
      %p453 = scmp.lt.s32.totalorder %s18, 0
      %s454 = scalar_select %p453, %s18, 0
      %s455 = smul.addr %s452, 8
      %s456 = sadd.s32 %s454, %s455
      %s457 = smul.addr %s456, 8
      %s458 = scalar_lea.vmem %s3, %s457
      // Predicated region
      $region33: #{dwconv_pallas.1} parent=31 // pred_check
        %p459 = pneg %p126
      $region34: #{dwconv_pallas.1} parent=31 // pred_check_branch
        %461 = sbr.rel (%p459) target = $region36
      $region35: #{dwconv_pallas.1} parent=31 // pred_region
        _
      $region36: #{dwconv_pallas.1} parent=31 // pred_fallthru
        _
    $region32: #{dwconv_pallas.1} parent=5 // pred_fallthru
      _
    %p462 = scmp.le.s32.totalorder 2, %s9
    // Predicated region
    $region37: #{dwconv_pallas.1} parent=5 // pred_check
      %p463 = pneg %p462
    $region38: #{dwconv_pallas.1} parent=5 // pred_check_branch
      %465 = sbr.rel (%p463) target = $region40
    $region39: #{dwconv_pallas.1} parent=5 // pred_region
      %s466 = ssub.s32 %s9, 2
      // Predicated region
      $region41: #{dwconv_pallas.1} parent=39 // pred_check
        %p467 = pneg %p132
      $region42: #{dwconv_pallas.1} parent=39 // pred_check_branch
        %469 = sbr.rel (%p467) target = $region44
      $region43: #{dwconv_pallas.1} parent=39 // pred_region
        %p470 = scmp.lt.s32.totalorder %s21, 1
        %s471 = scalar_select %p470, %s21, 1
        %p472 = scmp.lt.s32.totalorder %s20, 0
        %s473 = scalar_select %p472, %s20, 0
        %s474 = smul.addr %s471, 8
        %s475 = sadd.s32 %s473, %s474
        %s476 = smul.addr %s475, 8
        %s477 = scalar_lea.vmem %s3, %s476
      $region44: #{dwconv_pallas.1} parent=39 // pred_fallthru
        _
    $region40: #{dwconv_pallas.1} parent=5 // pred_fallthru
      _
  $region6: #{dwconv_pallas.1} parent=0 // loop_footer
    %s13 = sadd.s32 1, %s9
  $region7: #{dwconv_pallas.1} parent=0 // loop_footer_branch
    %8 = sbr.rel target = $region3
  $region8: #{dwconv_pallas.1} parent=0 // loop_exit
    _

</llo_original>
